<compile_context>
chip_gen: v6e
topology: v6e:2x2x1
jax: 0.10.0
libtpu: 0.0.40
codegen_flags: <defaults>
</compile_context>

<pallas_src>
import jax
import jax.numpy as jnp
from jax.experimental import pallas as pl
from jax.experimental.pallas import tpu as pltpu


def _round_up(x, m):
    return ((x + m - 1) // m) * m


def mlp_bottom_kernel(x_ref, w1_ref, b1_ref, w2_ref, b2_ref, o_ref):
    # Layer 1: Linear(input_dim, hidden_p) + ReLU  (MXU matmul, f32 accumulation)
    h = jnp.dot(x_ref[...], w1_ref[...], preferred_element_type=jnp.float32)
    h = jnp.maximum(h + b1_ref[...], 0.0)                # (TB, Hp) + (1, Hp)
    # Layer 2: Linear(hidden_p, out_p) + ReLU
    o = jnp.dot(h.astype(w2_ref.dtype), w2_ref[...],
                preferred_element_type=jnp.float32)
    o = jnp.maximum(o + b2_ref[...], 0.0)                # (TB, Np) + (1, Np)
    o_ref[...] = o.astype(o_ref.dtype)


def mlp_bottom_forward(x, w1, b1, w2, b2, *, tb_max=512):
    """x: (B, C, H, W) or (B, input_dim); w1: (input_dim, 32), w2: (32, output_dim).

    Returns (B, output_dim).  Matches torch's y = relu(relu(x@W1.T+b1)@W2.T+b2)
    with weights stored pre-transposed as (in_features, out_features).
    """
    B = x.shape[0]
    x2d = x.reshape(B, -1)                     # Flatten: free view, no dtype cast
    input_dim = x2d.shape[1]
    hidden = w1.shape[1]
    output_dim = w2.shape[1]
    dtype = x2d.dtype
    itemsize = jnp.dtype(dtype).itemsize

    # ---- lane-dense padding of hidden / output widths to 128 ----
    LANE = 128
    hidden_p = _round_up(hidden, LANE)
    out_p = _round_up(output_dim, LANE)

    cdt = dtype  # compute dtype for matmul operands (f32 here; bf16 also valid)
    w1p = jnp.zeros((input_dim, hidden_p), cdt).at[:, :hidden].set(w1.astype(cdt))
    b1p = jnp.zeros((1, hidden_p), jnp.float32).at[0, :hidden].set(
        b1.astype(jnp.float32))
    w2p = jnp.zeros((hidden_p, out_p), cdt).at[:hidden, :output_dim].set(
        w2.astype(cdt))
    b2p = jnp.zeros((1, out_p), jnp.float32).at[0, :output_dim].set(
        b2.astype(jnp.float32))

    # ---- batch tile: multiple of 8, bounded, sized against VMEM (v7x-safe) ----
    TB = min(tb_max, _round_up(B, 8))
    tile_budget = 24 * 1024 * 1024  # double-buffered x/out tiles + hidden temp
    def tile_bytes(tb):
        return 2 * tb * (input_dim + out_p) * itemsize + tb * hidden_p * 4
    while TB > 8 and tile_bytes(TB) > tile_budget:
        TB //= 2
    TB = max(8, (TB // 8) * 8)

    B_pad = _round_up(B, TB)
    if B_pad != B:
        x2d = jnp.pad(x2d, ((0, B_pad - B), (0, 0)))

    grid = (B_pad // TB,)

    weight_bytes = (input_dim * hidden_p + hidden_p * out_p) * itemsize \
        + (hidden_p + out_p) * 4
    vmem_limit = int(min(64 * 1024 * 1024,
                         weight_bytes + tile_bytes(TB) + 8 * 1024 * 1024))

    flops = 2 * B_pad * input_dim * hidden_p + 2 * B_pad * hidden_p * out_p
    bytes_accessed = (B_pad * input_dim + B_pad * out_p) * itemsize + weight_bytes
    cost = pl.CostEstimate(flops=flops, transcendentals=0,
                           bytes_accessed=bytes_accessed)

    out_padded = pl.pallas_call(
        mlp_bottom_kernel,
        out_shape=jax.ShapeDtypeStruct((B_pad, out_p), jnp.float32),
        grid=grid,
        in_specs=[
            pl.BlockSpec((TB, input_dim), lambda i: (i, 0)),   # x: batch-tiled
            pl.BlockSpec((input_dim, hidden_p), lambda i: (0, 0)),  # w1 resident
            pl.BlockSpec((1, hidden_p), lambda i: (0, 0)),          # b1 resident
            pl.BlockSpec((hidden_p, out_p), lambda i: (0, 0)),      # w2 resident
            pl.BlockSpec((1, out_p), lambda i: (0, 0)),             # b2 resident
        ],
        out_specs=pl.BlockSpec((TB, out_p), lambda i: (i, 0)),
        compiler_params=pltpu.CompilerParams(
            dimension_semantics=("parallel",),
            vmem_limit_bytes=vmem_limit),
        cost_estimate=cost,
    )(x2d, w1p, b1p, w2p, b2p)

    # Strip batch + lane padding.
    return out_padded[:B, :output_dim]


if __name__ == "__main__":
    # Small shapes consistent with the module: NCHW input (2, 4, 4, 4)
    # => input_dim = 4*4*4 = 64, hidden = 32, output_dim = 16.
    B, C, H, W = 2, 4, 4, 4
    input_dim = C * H * W
    hidden = 32
    output_dim = 16

    key = jax.random.PRNGKey(0)
    kx, kw1, kb1, kw2, kb2 = jax.random.split(key, 5)

    x = jax.random.normal(kx, (B, C, H, W), dtype=jnp.float32)

    # torch Linear stores (out, in); we keep the transpose (in, out).
    w1 = jax.random.normal(kw1, (input_dim, hidden), dtype=jnp.float32) * 0.1
    b1 = jax.random.normal(kb1, (hidden,), dtype=jnp.float32) * 0.1
    w2 = jax.random.normal(kw2, (hidden, output_dim), dtype=jnp.float32) * 0.1
    b2 = jax.random.normal(kb2, (output_dim,), dtype=jnp.float32) * 0.1

    out = mlp_bottom_forward(x, w1, b1, w2, b2)
    out = jax.block_until_ready(out)

    # Pure-JAX reference of the same semantics.
    x2d = x.reshape(B, -1)
    ref = jnp.maximum(x2d @ w1 + b1, 0.0)
    ref = jnp.maximum(ref @ w2 + b2, 0.0)
    assert out.shape == (B, output_dim), out.shape
    assert jnp.allclose(out, ref, atol=1e-5, rtol=1e-5)

    print("KERNEL_OK")
</pallas_src>

<mosaic_0001>
module attributes {stable_mosaic.version = 11 : i64} {
  func.func @mlp_bottom_kernel(%arg0: i32, %arg1: memref<8x64xf32, #tpu.memory_space<vmem>>, %arg2: memref<64x128xf32, #tpu.memory_space<vmem>>, %arg3: memref<1x128xf32, #tpu.memory_space<vmem>>, %arg4: memref<128x128xf32, #tpu.memory_space<vmem>>, %arg5: memref<1x128xf32, #tpu.memory_space<vmem>>, %arg6: memref<8x128xf32, #tpu.memory_space<vmem>>) attributes {dimension_semantics = [#tpu.dimension_semantics<parallel>], iteration_bounds = array<i64: 1>, scalar_prefetch = 0 : i64, scratch_operands = 0 : i64, tpu.core_type = #tpu.core_type<tc>, window_params = [{transform_indices = @transform_0, window_bounds = array<i64: 8, 64>}, {pipeline_mode = #tpu.pipeline_mode<synchronous>, transform_indices = @transform_1, window_bounds = array<i64: 64, 128>}, {pipeline_mode = #tpu.pipeline_mode<synchronous>, transform_indices = @transform_2, window_bounds = array<i64: 1, 128>}, {pipeline_mode = #tpu.pipeline_mode<synchronous>, transform_indices = @transform_3, window_bounds = array<i64: 128, 128>}, {pipeline_mode = #tpu.pipeline_mode<synchronous>, transform_indices = @transform_4, window_bounds = array<i64: 1, 128>}, {transform_indices = @transform_5, window_bounds = array<i64: 8, 128>}]} {
    %c0 = arith.constant 0 : index
    %c0_0 = arith.constant 0 : index
    %0 = vector.load %arg1[%c0, %c0_0] : memref<8x64xf32, #tpu.memory_space<vmem>>, vector<8x64xf32>
    %c0_1 = arith.constant 0 : index
    %c0_2 = arith.constant 0 : index
    %1 = vector.load %arg2[%c0_1, %c0_2] : memref<64x128xf32, #tpu.memory_space<vmem>>, vector<64x128xf32>
    %cst = arith.constant dense<0.000000e+00> : vector<8x128xf32>
    %2 = tpu.matmul %0, %1, %cst {dimension_numbers = #tpu.dot_dimension_numbers<[1], [0], [0], [1], [0, 0, 1, 1], [], []>} : vector<8x64xf32>, vector<64x128xf32>, vector<8x128xf32> -> vector<8x128xf32>
    %c0_3 = arith.constant 0 : index
    %c0_4 = arith.constant 0 : index
    %3 = vector.load %arg3[%c0_3, %c0_4] : memref<1x128xf32, #tpu.memory_space<vmem>>, vector<1x128xf32>
    %4 = vector.broadcast %3 : vector<1x128xf32> to vector<8x128xf32>
    %5 = arith.addf %2, %4 : vector<8x128xf32>
    %cst_5 = arith.constant 0.000000e+00 : f32
    %6 = vector.broadcast %cst_5 : f32 to vector<8x128xf32>
    %7 = arith.maximumf %5, %6 : vector<8x128xf32>
    %c0_6 = arith.constant 0 : index
    %c0_7 = arith.constant 0 : index
    %8 = vector.load %arg4[%c0_6, %c0_7] : memref<128x128xf32, #tpu.memory_space<vmem>>, vector<128x128xf32>
    %cst_8 = arith.constant dense<0.000000e+00> : vector<8x128xf32>
    %9 = tpu.matmul %7, %8, %cst_8 {dimension_numbers = #tpu.dot_dimension_numbers<[1], [0], [0], [1], [0, 0, 1, 1], [], []>} : vector<8x128xf32>, vector<128x128xf32>, vector<8x128xf32> -> vector<8x128xf32>
    %c0_9 = arith.constant 0 : index
    %c0_10 = arith.constant 0 : index
    %10 = vector.load %arg5[%c0_9, %c0_10] : memref<1x128xf32, #tpu.memory_space<vmem>>, vector<1x128xf32>
    %11 = vector.broadcast %10 : vector<1x128xf32> to vector<8x128xf32>
    %12 = arith.addf %9, %11 : vector<8x128xf32>
    %cst_11 = arith.constant 0.000000e+00 : f32
    %13 = vector.broadcast %cst_11 : f32 to vector<8x128xf32>
    %14 = arith.maximumf %12, %13 : vector<8x128xf32>
    %c0_12 = arith.constant 0 : index
    %c0_13 = arith.constant 0 : index
    %15 = vector.load %arg6[%c0_12, %c0_13] : memref<8x128xf32, #tpu.memory_space<vmem>>, vector<8x128xf32>
    tpu.vector_store %arg6[%c0_12, %c0_13], %14 {strides = array<i32>} : memref<8x128xf32, #tpu.memory_space<vmem>>, vector<8x128xf32>,
    return
  }
  func.func @transform_0(%arg0: i32) -> (i32, i32) {
    %c0_i32 = arith.constant 0 : i32
    %c0_i32_0 = arith.constant 0 : i32
    return %arg0, %c0_i32 : i32, i32
  }
  func.func @transform_1(%arg0: i32) -> (i32, i32) {
    %c0_i32 = arith.constant 0 : i32
    %c0_i32_0 = arith.constant 0 : i32
    %c0_i32_1 = arith.constant 0 : i32
    return %c0_i32, %c0_i32_0 : i32, i32
  }
  func.func @transform_2(%arg0: i32) -> (i32, i32) {
    %c0_i32 = arith.constant 0 : i32
    %c0_i32_0 = arith.constant 0 : i32
    %c0_i32_1 = arith.constant 0 : i32
    return %c0_i32, %c0_i32_0 : i32, i32
  }
  func.func @transform_3(%arg0: i32) -> (i32, i32) {
    %c0_i32 = arith.constant 0 : i32
    %c0_i32_0 = arith.constant 0 : i32
    %c0_i32_1 = arith.constant 0 : i32
    return %c0_i32, %c0_i32_0 : i32, i32
  }
  func.func @transform_4(%arg0: i32) -> (i32, i32) {
    %c0_i32 = arith.constant 0 : i32
    %c0_i32_0 = arith.constant 0 : i32
    %c0_i32_1 = arith.constant 0 : i32
    return %c0_i32, %c0_i32_0 : i32, i32
  }
  func.func @transform_5(%arg0: i32) -> (i32, i32) {
    %c0_i32 = arith.constant 0 : i32
    %c0_i32_0 = arith.constant 0 : i32
    return %arg0, %c0_i32 : i32, i32
  }
}

</mosaic_0001>

<llo_original>
// kernel: tpu_custom_call.1
$region0: #{tpu_custom_call.1}
  #allocation0 [shape = 'u32[]', space=smem, size = 0x4, offset = 0x4, fixed_abs, tag = 'smem constant byte address 0x4 - core index']
  #allocation1 [shape = 'u32[144,128]{1,0:T(1,128)}', space=vmem, size = 0x12000, scoped, tag = 'internal scratch']
  %s0 = inlined_call_operand.hbm [shape: f32[8,64], index: 0, kind: input, shape index: {}]
  %s1 = inlined_call_operand.hbm [shape: f32[64,128], index: 1, kind: input, shape index: {}]
  %s2 = inlined_call_operand.vmem [shape: f32[1,128], index: 2, kind: input, shape index: {}]
  %s3 = inlined_call_operand.hbm [shape: f32[128,128], index: 3, kind: input, shape index: {}]
  %s4 = inlined_call_operand.vmem [shape: f32[1,128], index: 4, kind: input, shape index: {}]
  %s5 = inlined_call_operand.hbm [shape: f32[8,128], index: 5, kind: output, shape index: {}]
  %s6 = sld [smem:[#allocation0]]
  $region42: #{tpu_custom_call.1} parent=0
    _
  %s8 = ssub.s32 1, %s6
  %s9 = scalar_select 0, %s8, %s6
  $region1: #{tpu_custom_call.1} parent=0
    #allocation2 [shape = 'u8[4096]{0}', space=vmem, size = 0x1000, scoped, tag = 'input window, operand 0, single buffered']
    #allocation3 [shape = 's32[1]{0}', space=sflag, size = 0x4, scoped, tag = 'scoped memory for tpu_custom_call.1']
    #allocation4 [shape = 's32[1]{0}', space=sflag, size = 0x4, scoped, tag = 'scoped memory for tpu_custom_call.1']
    #allocation5 [shape = 'u8[32768]{0}', space=vmem, size = 0x8000, scoped, tag = 'input window, operand 1, single buffered']
    #allocation6 [shape = 's32[1]{0}', space=sflag, size = 0x4, scoped, tag = 'scoped memory for tpu_custom_call.1']
    #allocation7 [shape = 'u8[65536]{0}', space=vmem, size = 0x10000, scoped, tag = 'input window, operand 3, single buffered']
    #allocation8 [shape = 'u8[4096]{0}', space=vmem, size = 0x1000, scoped, tag = 'output window, operand 0, single buffered']
    %10 = vsyncpa [#allocation3], 0
    %11 = vsyncpa [#allocation6], 0
    %12 = vsyncpa [#allocation4], 0
    // Predicated region
    $region2: #{tpu_custom_call.1} parent=1 // pred_check
      _
    $region3: #{tpu_custom_call.1} parent=1 // pred_check_branch
      %14 = sbr.rel (0) target = $region5
    $region4: #{tpu_custom_call.1} parent=1 // pred_region
      %s16 = ssub.s32 128, 128
      %17 = vsyncadd [#allocation3], %s16
      %s19 = sshll.u32 [#allocation2], 4
      %s20 = int_to_ptr.vmem [resolvable:$true] %s19
      %22 = dma.hbm_to_vmem [thread:$0]  %s0, 128, %s20, [#allocation3]
    $region5: #{tpu_custom_call.1} parent=1 // pred_fallthru
      _
    // Predicated region
    $region6: #{tpu_custom_call.1} parent=1 // pred_check
      _
    $region7: #{tpu_custom_call.1} parent=1 // pred_check_branch
      %24 = sbr.rel (0) target = $region9
    $region8: #{tpu_custom_call.1} parent=1 // pred_region
      %s26 = ssub.s32 1024, 1024
      %27 = vsyncadd [#allocation6], %s26
      %s28 = sshll.u32 [#allocation5], 4
      %s29 = int_to_ptr.vmem [resolvable:$true] %s28
      %34 = dma.hbm_to_vmem [thread:$0]  %s1, 1024, %s29, [#allocation6], 128, 128, 8
    $region9: #{tpu_custom_call.1} parent=1 // pred_fallthru
      _
    // Predicated region
    $region10: #{tpu_custom_call.1} parent=1 // pred_check
      _
    $region11: #{tpu_custom_call.1} parent=1 // pred_check_branch
      %36 = sbr.rel (0) target = $region13
    $region12: #{tpu_custom_call.1} parent=1 // pred_region
      _
    $region13: #{tpu_custom_call.1} parent=1 // pred_fallthru
      _
    // Predicated region
    $region14: #{tpu_custom_call.1} parent=1 // pred_check
      _
    $region15: #{tpu_custom_call.1} parent=1 // pred_check_branch
      %38 = sbr.rel (0) target = $region17
    $region16: #{tpu_custom_call.1} parent=1 // pred_region
      %s40 = ssub.s32 2048, 2048
      %41 = vsyncadd [#allocation6], %s40
      %s42 = sshll.u32 [#allocation7], 4
      %s43 = int_to_ptr.vmem [resolvable:$true] %s42
      %48 = dma.hbm_to_vmem [thread:$0]  %s3, 2048, %s43, [#allocation6], 128, 128, 8
    $region17: #{tpu_custom_call.1} parent=1 // pred_fallthru
      _
    // Predicated region
    $region18: #{tpu_custom_call.1} parent=1 // pred_check
      _
    $region19: #{tpu_custom_call.1} parent=1 // pred_check_branch
      %50 = sbr.rel (0) target = $region21
    $region20: #{tpu_custom_call.1} parent=1 // pred_region
      _
    $region21: #{tpu_custom_call.1} parent=1 // pred_fallthru
      _
    // Predicated region
    $region22: #{tpu_custom_call.1} parent=1 // pred_check
      _
    $region23: #{tpu_custom_call.1} parent=1 // pred_check_branch
      %52 = sbr.rel (0) target = $region25
    $region24: #{tpu_custom_call.1} parent=1 // pred_region
      %53 = dma.done [#allocation3], 128
    $region25: #{tpu_custom_call.1} parent=1 // pred_fallthru
      _
    // Predicated region
    $region26: #{tpu_custom_call.1} parent=1 // pred_check
      _
    $region27: #{tpu_custom_call.1} parent=1 // pred_check_branch
      %55 = sbr.rel (0) target = $region29
    $region28: #{tpu_custom_call.1} parent=1 // pred_region
      %56 = dma.done [#allocation6], 1024
    $region29: #{tpu_custom_call.1} parent=1 // pred_fallthru
      _
    // Predicated region
    $region30: #{tpu_custom_call.1} parent=1 // pred_check
      _
    $region31: #{tpu_custom_call.1} parent=1 // pred_check_branch
      %58 = sbr.rel (0) target = $region33
    $region32: #{tpu_custom_call.1} parent=1 // pred_region
      %59 = dma.done [#allocation6], 2048
    $region33: #{tpu_custom_call.1} parent=1 // pred_fallthru
      _
    %v60 = vld [vmem:[#allocation2] sm:$0xff]
    %v61 = vld [vmem:[#allocation5] sm:$0xff]
    %v62 = vld [vmem:[#allocation5 + $0x8] sm:$0xff]
    %v63 = vld [vmem:[#allocation5 + $0x10] sm:$0xff]
    %v64 = vld [vmem:[#allocation5 + $0x18] sm:$0xff]
    %v65 = vld [vmem:[#allocation5 + $0x20] sm:$0xff]
    %v66 = vld [vmem:[#allocation5 + $0x28] sm:$0xff]
    %v67 = vld [vmem:[#allocation5 + $0x30] sm:$0xff]
    %v68 = vld [vmem:[#allocation5 + $0x38] sm:$0xff]
    %v69 = vld [vmem:[%s2] sm:$0x1]
    %v71 = vlaneseq
    %v72 = vshrl.u32 %v71, 7
    %v73 = vsub.s32 0, %v72
    %v74 = vrot.slane %v69, %v73
    %vm76 = vcmask 523264
    %v78 = vsel %vm76, %v60, 0
    %80 = vmatprep.subr.mxu0 0.0
    %81 = vmatpush1.msra.mxu0 0.0
    %82 = vmatprep.subr.mxu0 0.0
    %83 = vmatpush1.msra.mxu0 0.0
    %84 = vmatprep.subr.mxu0 0.0
    %85 = vmatpush1.msra.mxu0 0.0
    %86 = vmatprep.subr.mxu0 0.0
    %87 = vmatpush1.msra.mxu0 0.0
    %88 = vmatprep.subr.mxu0 0.0
    %89 = vmatpush1.msra.mxu0 0.0
    %90 = vmatprep.subr.mxu0 0.0
    %91 = vmatpush1.msra.mxu0 0.0
    %92 = vmatprep.subr.mxu0 0.0
    %93 = vmatpush1.msra.mxu0 0.0
    %94 = vmatprep.subr.mxu0 0.0
    %95 = vmatpush1.msra.mxu0 0.0
    %96 = vmatprep.subr.mxu0 0.0
    %97 = vmatpush1.msra.mxu0 %v68
    %98 = vmatprep.subr.mxu0 0.0
    %99 = vmatpush1.msra.mxu0 %v67
    %100 = vmatprep.subr.mxu0 0.0
    %101 = vmatpush1.msra.mxu0 %v66
    %102 = vmatprep.subr.mxu0 0.0
    %103 = vmatpush1.msra.mxu0 %v65
    %104 = vmatprep.subr.mxu0 0.0
    %105 = vmatpush1.msra.mxu0 %v64
    %106 = vmatprep.subr.mxu0 0.0
    %107 = vmatpush1.msra.mxu0 %v63
    %108 = vmatprep.subr.mxu0 0.0
    %109 = vmatpush1.msra.mxu0 %v62
    %110 = vmatprep.subr.mxu0 0.0
    %111 = vmatpush1.msra.mxu0 %v61
    %112 = vmatprep.subr.mxu0 0.0
    %113 = vmatpush2.msra.mxu0 0.0
    %114 = vmatprep.subr.mxu0 0.0
    %115 = vmatpush2.msra.mxu0 0.0
    %116 = vmatprep.subr.mxu0 0.0
    %117 = vmatpush2.msra.mxu0 0.0
    %118 = vmatprep.subr.mxu0 0.0
    %119 = vmatpush2.msra.mxu0 0.0
    %120 = vmatprep.subr.mxu0 0.0
    %121 = vmatpush2.msra.mxu0 0.0
    %122 = vmatprep.subr.mxu0 0.0
    %123 = vmatpush2.msra.mxu0 0.0
    %124 = vmatprep.subr.mxu0 0.0
    %125 = vmatpush2.msra.mxu0 0.0
    %126 = vmatprep.subr.mxu0 0.0
    %127 = vmatpush2.msra.mxu0 0.0
    %128 = vmatprep.subr.mxu0 0.0
    %129 = vmatpush2.msra.mxu0 0.0
    %130 = vmatprep.subr.mxu0 0.0
    %131 = vmatpush2.msra.mxu0 0.0
    %132 = vmatprep.subr.mxu0 0.0
    %133 = vmatpush2.msra.mxu0 0.0
    %134 = vmatprep.subr.mxu0 0.0
    %135 = vmatpush2.msra.mxu0 0.0
    %136 = vmatprep.subr.mxu0 0.0
    %137 = vmatpush2.msra.mxu0 0.0
    %138 = vmatprep.subr.mxu0 0.0
    %139 = vmatpush2.msra.mxu0 0.0
    %140 = vmatprep.subr.mxu0 0.0
    %141 = vmatpush2.msra.mxu0 0.0
    %142 = vmatprep.subr.mxu0 0.0
    %143 = vmatpush2.msra.mxu0 0.0
    %144 = vmatprep.mubr.f32.mxu0 0.0
    %145 = vmatmul.mubr.f32.gmra.mxu0 %v78
    %v146 = vpop.f32.mrf.mxu0
    %v147 = vadd.f32 %v74, %v146
    %v148 = vpop.f32.mrf.mxu0
    %149 = vdwg.mxu0
    %v150 = vmax.f32 %v147, 0.0
    %v151 = vld [vmem:[#allocation7] sm:$0xff]
    %v152 = vld [vmem:[#allocation7 + $0x8] sm:$0xff]
    %v153 = vld [vmem:[#allocation7 + $0x10] sm:$0xff]
    %v154 = vld [vmem:[#allocation7 + $0x18] sm:$0xff]
    %v155 = vld [vmem:[#allocation7 + $0x20] sm:$0xff]
    %v156 = vld [vmem:[#allocation7 + $0x28] sm:$0xff]
    %v157 = vld [vmem:[#allocation7 + $0x30] sm:$0xff]
    %v158 = vld [vmem:[#allocation7 + $0x38] sm:$0xff]
    %v159 = vld [vmem:[#allocation7 + $0x40] sm:$0xff]
    %v160 = vld [vmem:[#allocation7 + $0x48] sm:$0xff]
    %v161 = vld [vmem:[#allocation7 + $0x50] sm:$0xff]
    %v162 = vld [vmem:[#allocation7 + $0x58] sm:$0xff]
    %v163 = vld [vmem:[#allocation7 + $0x60] sm:$0xff]
    %v164 = vld [vmem:[#allocation7 + $0x68] sm:$0xff]
    %v165 = vld [vmem:[#allocation7 + $0x70] sm:$0xff]
    %v166 = vld [vmem:[#allocation7 + $0x78] sm:$0xff]
    %v167 = vld [vmem:[%s4] sm:$0x1]
    %v169 = vlaneseq
    %v170 = vshrl.u32 %v169, 7
    %v171 = vsub.s32 0, %v170
    %v172 = vrot.slane %v167, %v171
    %174 = vmatprep.subr.mxu0 0.0
    %175 = vmatpush1.msra.mxu0 %v166
    %176 = vmatprep.subr.mxu0 0.0
    %177 = vmatpush1.msra.mxu0 %v165
    %178 = vmatprep.subr.mxu0 0.0
    %179 = vmatpush1.msra.mxu0 %v164
    %180 = vmatprep.subr.mxu0 0.0
    %181 = vmatpush1.msra.mxu0 %v163
    %182 = vmatprep.subr.mxu0 0.0
    %183 = vmatpush1.msra.mxu0 %v162
    %184 = vmatprep.subr.mxu0 0.0
    %185 = vmatpush1.msra.mxu0 %v161
    %186 = vmatprep.subr.mxu0 0.0
    %187 = vmatpush1.msra.mxu0 %v160
    %188 = vmatprep.subr.mxu0 0.0
    %189 = vmatpush1.msra.mxu0 %v159
    %190 = vmatprep.subr.mxu0 0.0
    %191 = vmatpush1.msra.mxu0 %v158
    %192 = vmatprep.subr.mxu0 0.0
    %193 = vmatpush1.msra.mxu0 %v157
    %194 = vmatprep.subr.mxu0 0.0
    %195 = vmatpush1.msra.mxu0 %v156
    %196 = vmatprep.subr.mxu0 0.0
    %197 = vmatpush1.msra.mxu0 %v155
    %198 = vmatprep.subr.mxu0 0.0
    %199 = vmatpush1.msra.mxu0 %v154
    %200 = vmatprep.subr.mxu0 0.0
    %201 = vmatpush1.msra.mxu0 %v153
    %202 = vmatprep.subr.mxu0 0.0
    %203 = vmatpush1.msra.mxu0 %v152
    %204 = vmatprep.subr.mxu0 0.0
    %205 = vmatpush1.msra.mxu0 %v151
    %206 = vmatprep.subr.mxu0 0.0
    %207 = vmatpush2.msra.mxu0 0.0
    %208 = vmatprep.subr.mxu0 0.0
    %209 = vmatpush2.msra.mxu0 0.0
    %210 = vmatprep.subr.mxu0 0.0
    %211 = vmatpush2.msra.mxu0 0.0
    %212 = vmatprep.subr.mxu0 0.0
    %213 = vmatpush2.msra.mxu0 0.0
    %214 = vmatprep.subr.mxu0 0.0
    %215 = vmatpush2.msra.mxu0 0.0
    %216 = vmatprep.subr.mxu0 0.0
    %217 = vmatpush2.msra.mxu0 0.0
    %218 = vmatprep.subr.mxu0 0.0
    %219 = vmatpush2.msra.mxu0 0.0
    %220 = vmatprep.subr.mxu0 0.0
    %221 = vmatpush2.msra.mxu0 0.0
    %222 = vmatprep.subr.mxu0 0.0
    %223 = vmatpush2.msra.mxu0 0.0
    %224 = vmatprep.subr.mxu0 0.0
    %225 = vmatpush2.msra.mxu0 0.0
    %226 = vmatprep.subr.mxu0 0.0
    %227 = vmatpush2.msra.mxu0 0.0
    %228 = vmatprep.subr.mxu0 0.0
    %229 = vmatpush2.msra.mxu0 0.0
    %230 = vmatprep.subr.mxu0 0.0
    %231 = vmatpush2.msra.mxu0 0.0
    %232 = vmatprep.subr.mxu0 0.0
    %233 = vmatpush2.msra.mxu0 0.0
    %234 = vmatprep.subr.mxu0 0.0
    %235 = vmatpush2.msra.mxu0 0.0
    %236 = vmatprep.subr.mxu0 0.0
    %237 = vmatpush2.msra.mxu0 0.0
    %238 = vmatprep.mubr.f32.mxu0 0.0
    %239 = vmatmul.mubr.f32.gmra.mxu0 %v150
    %v240 = vpop.f32.mrf.mxu0
    %v241 = vadd.f32 %v172, %v240
    %v242 = vpop.f32.mrf.mxu0
    %243 = vdwg.mxu0
    %v244 = vmax.f32 %v241, 0.0
    %245 = vst [vmem:[#allocation8] sm:$0xff] %v244
    // Predicated region
    $region34: #{tpu_custom_call.1} parent=1 // pred_check
      _
    $region35: #{tpu_custom_call.1} parent=1 // pred_check_branch
      %247 = sbr.rel (0) target = $region37
    $region36: #{tpu_custom_call.1} parent=1 // pred_region
      %s249 = ssub.s32 128, 128
      %250 = vsyncadd [#allocation4], %s249
      %s252 = sshll.u32 [#allocation8], 4
      %s253 = int_to_ptr.vmem [resolvable:$true] %s252
      %255 = dma.vmem_to_hbm [thread:$0]  %s253, 128, %s5, [#allocation4]
    $region37: #{tpu_custom_call.1} parent=1 // pred_fallthru
      _
    // Predicated region
    $region38: #{tpu_custom_call.1} parent=1 // pred_check
      _
    $region39: #{tpu_custom_call.1} parent=1 // pred_check_branch
      %257 = sbr.rel (0) target = $region41
    $region40: #{tpu_custom_call.1} parent=1 // pred_region
      %258 = dma.done [#allocation4], 128
    $region41: #{tpu_custom_call.1} parent=1 // pred_fallthru
      _
    %259 = vsyncpa [#allocation3], 1
    %260 = vsyncpa [#allocation6], 1
    %261 = vsyncpa [#allocation4], 1

</llo_original>
